<compile_context>
chip_gen: v7x
topology: tpu7x:2x2x1
jax: 0.10.0
libtpu: 0.0.40
codegen_flags: <defaults>
</compile_context>

<pallas_src>
import jax
import jax.numpy as jnp
from jax import lax
from jax.experimental import pallas as pl
from jax.experimental.pallas import tpu as pltpu


def _decode_mlp_kernel(x_ref, w_ref, b_ref, o_ref):
    # x_ref : (G*C, TS)     packed activations, lane dim = packed sequence
    # w_ref : (G*C, G*OUT)  block-diagonal weight (VMEM-resident, const index_map)
    # b_ref : (1, G*OUT)    tiled bias            (VMEM-resident, const index_map)
    # o_ref : (TS, G*OUT)   lane-dense output tile
    # Contract the G*C axis (dim 0 of both operands) so the result vregs are
    # lane-dense (lane dim = G*OUT ~ 128); f32 MXU accumulation, exact f32.
    y = lax.dot_general(
        x_ref[...], w_ref[...],
        dimension_numbers=(((0,), (0,)), ((), ())),
        preferred_element_type=jnp.float32,
        precision=lax.Precision.HIGHEST)
    o_ref[...] = (y + b_ref[...]).astype(o_ref.dtype)


def _round_up(x, m):
    return (x + m - 1) // m * m


def _pick_seq_tile(sq, bytes_per_pos, tile_budget, *, min_steps=4, lane=128):
    """Packed-sequence tile: multiple of 128 (or the full packed sequence).

    Capped by a padding-aware VMEM budget AND so that the sequence axis keeps
    >= min_steps grid steps (step i's writeback overlaps step i+1's DMA/compute).
    """
    if sq <= lane:
        return sq                                   # one tiny block covers it
    budget_tile = max(lane, (tile_budget // max(bytes_per_pos, 1)) // lane * lane)
    step_tile = max(lane, (pl.cdiv(sq, min_steps) // lane) * lane)
    return min(budget_tile, step_tile)


def decode_mlp(x_nchw, weight, bias, *, out_dtype=None):
    """DecodeMLP forward.

    x_nchw: (B, C, H, W); weight: (OUT, C) (PyTorch nn.Linear layout);
    bias: (OUT,).  Returns (B, H*W, OUT).

    out_dtype: optionally store the output in e.g. jnp.bfloat16 (the store is
    ~8x the load traffic, so this cuts total HBM bytes ~44%); f32 accumulation
    is always kept.  Defaults to the input dtype.
    """
    B, C, H, W = x_nchw.shape
    OUT, C_w = weight.shape
    assert C_w == C, (C_w, C)
    S = H * W
    out_dtype = x_nchw.dtype if out_dtype is None else out_dtype

    # ---- lane-packing factor: fold G consecutive sequence positions into the
    # lane dim of the output so the store is lane-dense (G*OUT ~ 128).
    G = 1
    if OUT < 128:
        for g in range(128 // OUT, 0, -1):
            if S % g == 0:
                G = g
                break
    GC, GOUT, SQ = G * C, G * OUT, S // G

    # ---- wrapper-side repack (cheap: touches only the C-wide input once).
    x_bcs = x_nchw.reshape(B, C, S)                 # free contiguous reshape
    if G == 1:
        x_packed = x_bcs                            # (B, C, S)
    else:
        # x_packed[b, g*C + c, q] = x[b, c, q*G + g]
        x_packed = (x_bcs.reshape(B, C, SQ, G)
                    .transpose(0, 3, 1, 2)
                    .reshape(B, GC, SQ))

    w_t = weight.T                                  # (C, OUT), tiny
    if G == 1:
        w_block = w_t
    else:
        # Block-diagonal weight: kron(I_G, W^T)[g*C+c, g'*OUT+o] = W[o,c]·[g==g']
        w_block = jnp.kron(jnp.eye(G, dtype=w_t.dtype), w_t)   # (GC, GOUT)
    b_block = jnp.tile(bias, G).reshape(1, GOUT).astype(jnp.float32)

    # ---- generation-aware VMEM budget with (8,128)-padding-aware estimate.
    try:
        vmem_cap = pltpu.get_tpu_info().vmem_capacity_bytes
    except Exception:
        vmem_cap = 64 * 1024 * 1024                 # conservative (v7x per-TC)
    vmem_limit = int(min(vmem_cap // 2, 64 * 1024 * 1024))   # 64MiB v5e/v6e, 32MiB v7x
    x_item = jnp.dtype(x_packed.dtype).itemsize
    o_item = jnp.dtype(out_dtype).itemsize
    bytes_per_pos = 2 * (_round_up(GC, 8) * x_item            # dbl-buffered input
                         + _round_up(GOUT, 128) * o_item)     # dbl-buffered output
    seq_tile = _pick_seq_tile(SQ, bytes_per_pos, (vmem_limit * 3) // 4)
    seq_steps = pl.cdiv(SQ, seq_tile)

    out_packed = pl.pallas_call(
        _decode_mlp_kernel,
        out_shape=jax.ShapeDtypeStruct((B, SQ, GOUT), out_dtype),
        grid_spec=pltpu.PrefetchScalarGridSpec(
            num_scalar_prefetch=0,
            grid=(B, seq_steps),
            in_specs=[
                # Packed NCHW-native activation tile: lane dim = packed seq.
                pl.BlockSpec((None, GC, seq_tile), lambda b, s: (b, 0, s)),
                # Weight / bias: constant index_maps -> stay VMEM-resident.
                pl.BlockSpec((GC, GOUT), lambda b, s: (0, 0)),
                pl.BlockSpec((1, GOUT), lambda b, s: (0, 0)),
            ],
            out_specs=pl.BlockSpec((None, seq_tile, GOUT), lambda b, s: (b, s, 0)),
        ),
        compiler_params=pltpu.CompilerParams(
            # Batch and sequence tiles are independent -> shard across the two
            # TensorCores on v7x.
            dimension_semantics=("parallel", "parallel"),
            vmem_limit_bytes=vmem_limit,
        ),
    )(x_packed, w_block, b_block)

    # Byte-identical unpack: (B, S//G, G*OUT) -> (B, S, OUT).
    return out_packed.reshape(B, S, OUT)


def decode_mlp_ref(x_nchw, weight, bias):
    B, C, H, W = x_nchw.shape
    x_bsc = jnp.transpose(x_nchw.reshape(B, C, H * W), (0, 2, 1))
    y = jnp.einsum('bsc,oc->bso', x_bsc, weight,
                   precision=lax.Precision.HIGHEST)
    return y + bias


if __name__ == "__main__":
    key = jax.random.PRNGKey(0)
    B, C, H, W = 2, 4, 16, 16          # input_dim = C = 4
    OUT = 32                           # output_dim = 32

    k_x, k_w, k_b = jax.random.split(key, 3)
    x = jax.random.normal(k_x, (B, C, H, W), dtype=jnp.float32)
    # nn.Linear(input_dim, output_dim) params: weight (OUT, C), bias (OUT,)
    weight = jax.random.normal(k_w, (OUT, C), dtype=jnp.float32) * 0.1
    bias = jax.random.normal(k_b, (OUT,), dtype=jnp.float32) * 0.1

    y = decode_mlp(x, weight, bias)
    y = jax.block_until_ready(y)

    y_ref = decode_mlp_ref(x, weight, bias)
    assert y.shape == (B, H * W, OUT), y.shape
    # With HIGHEST precision on both sides the observed error is ~1e-6; the
    # looser tolerance only absorbs a potential backend default-precision
    # (bf16-pass) matmul decomposition, while still catching any real
    # packing / indexing / bias bug (those produce O(0.1-1) errors).
    assert jnp.allclose(y, y_ref, atol=2e-3, rtol=2e-3), "mismatch vs reference"

    print("KERNEL_OK")
</pallas_src>

<mosaic_0001>
module attributes {stable_mosaic.version = 11 : i64} {
  func.func @_decode_mlp_kernel(%arg0: i32, %arg1: i32, %arg2: memref<1x16x64xf32, #tpu.memory_space<vmem>>, %arg3: memref<16x128xf32, #tpu.memory_space<vmem>>, %arg4: memref<1x128xf32, #tpu.memory_space<vmem>>, %arg5: memref<1x64x128xf32, #tpu.memory_space<vmem>>) attributes {dimension_semantics = [#tpu.dimension_semantics<parallel>, #tpu.dimension_semantics<parallel>], iteration_bounds = array<i64: 2, 1>, scalar_prefetch = 0 : i64, scratch_operands = 0 : i64, tpu.core_type = #tpu.core_type<tc>, window_params = [{transform_indices = @transform_0, window_bounds = array<i64: 1, 16, 64>}, {pipeline_mode = #tpu.pipeline_mode<synchronous>, transform_indices = @transform_1, window_bounds = array<i64: 16, 128>}, {pipeline_mode = #tpu.pipeline_mode<synchronous>, transform_indices = @transform_2, window_bounds = array<i64: 1, 128>}, {transform_indices = @transform_3, window_bounds = array<i64: 1, 64, 128>}]} {
    %c0 = arith.constant 0 : index
    %c0_0 = arith.constant 0 : index
    %c0_1 = arith.constant 0 : index
    %0 = vector.load %arg2[%c0, %c0_0, %c0_1] : memref<1x16x64xf32, #tpu.memory_space<vmem>>, vector<1x16x64xf32>
    %1 = vector.shape_cast %0 : vector<1x16x64xf32> to vector<16x64xf32>
    %c0_2 = arith.constant 0 : index
    %c0_3 = arith.constant 0 : index
    %2 = vector.load %arg3[%c0_2, %c0_3] : memref<16x128xf32, #tpu.memory_space<vmem>>, vector<16x128xf32>
    %cst = arith.constant dense<0.000000e+00> : vector<64x128xf32>
    %3 = tpu.matmul %1, %2, %cst {dimension_numbers = #tpu.dot_dimension_numbers<[0], [0], [1], [1], [0, 1, 1, 1], [], []>, precision = #tpu.contract_precision<fp32>} : vector<16x64xf32>, vector<16x128xf32>, vector<64x128xf32> -> vector<64x128xf32>
    %c0_4 = arith.constant 0 : index
    %c0_5 = arith.constant 0 : index
    %4 = vector.load %arg4[%c0_4, %c0_5] : memref<1x128xf32, #tpu.memory_space<vmem>>, vector<1x128xf32>
    %5 = vector.broadcast %4 : vector<1x128xf32> to vector<64x128xf32>
    %6 = arith.addf %3, %5 : vector<64x128xf32>
    %c0_6 = arith.constant 0 : index
    %c0_7 = arith.constant 0 : index
    %c0_8 = arith.constant 0 : index
    %7 = vector.load %arg5[%c0_6, %c0_7, %c0_8] : memref<1x64x128xf32, #tpu.memory_space<vmem>>, vector<1x64x128xf32>
    %8 = vector.shape_cast %7 : vector<1x64x128xf32> to vector<64x128xf32>
    %9 = vector.shape_cast %6 : vector<64x128xf32> to vector<1x64x128xf32>
    tpu.vector_store %arg5[%c0_6, %c0_7, %c0_8], %9 {strides = array<i32>} : memref<1x64x128xf32, #tpu.memory_space<vmem>>, vector<1x64x128xf32>,
    return
  }
  func.func @transform_0(%arg0: i32, %arg1: i32) -> (i32, i32, i32) {
    %c0_i32 = arith.constant 0 : i32
    %c0_i32_0 = arith.constant 0 : i32
    return %arg0, %c0_i32, %arg1 : i32, i32, i32
  }
  func.func @transform_1(%arg0: i32, %arg1: i32) -> (i32, i32) {
    %c0_i32 = arith.constant 0 : i32
    %c0_i32_0 = arith.constant 0 : i32
    %c0_i32_1 = arith.constant 0 : i32
    return %c0_i32, %c0_i32_0 : i32, i32
  }
  func.func @transform_2(%arg0: i32, %arg1: i32) -> (i32, i32) {
    %c0_i32 = arith.constant 0 : i32
    %c0_i32_0 = arith.constant 0 : i32
    %c0_i32_1 = arith.constant 0 : i32
    return %c0_i32, %c0_i32_0 : i32, i32
  }
  func.func @transform_3(%arg0: i32, %arg1: i32) -> (i32, i32, i32) {
    %c0_i32 = arith.constant 0 : i32
    %c0_i32_0 = arith.constant 0 : i32
    return %arg0, %arg1, %c0_i32 : i32, i32, i32
  }
}

</mosaic_0001>

<llo_original>
// kernel: tpu_custom_call.1
$region0: #{tpu_custom_call.1}
  #allocation0 [shape = 'u32[]', space=smem, size = 0x4, offset = 0x4, fixed_abs, tag = 'smem constant byte address 0x4 - core index']
  #allocation1 [shape = 'u32[144,128]{1,0:T(1,128)}', space=vmem, size = 0x12000, scoped, tag = 'internal scratch']
  %s0 = inlined_call_operand.hbm [shape: f32[2,16,64], index: 0, kind: input, shape index: {}]
  %s1 = inlined_call_operand.hbm [shape: f32[16,128], index: 1, kind: input, shape index: {}]
  %s2 = inlined_call_operand.vmem [shape: f32[1,128], index: 2, kind: input, shape index: {}]
  %s3 = inlined_call_operand.hbm [shape: f32[2,64,128], index: 3, kind: output, shape index: {}]
  %s4 = sld [smem:[#allocation0]]
  $region53: #{tpu_custom_call.1} parent=0
    _
  %s6 = ssub.s32 1, %s4
  %s7 = scalar_select 0, %s6, %s4
  $region1: #{tpu_custom_call.1} parent=0
    #allocation2 [shape = 'u8[16384]{0}', space=vmem, size = 0x4000, scoped, tag = 'input window, operand 0']
    #allocation3 [shape = 's32[2]{0}', space=sflag, size = 0x8, scoped, tag = 'scoped memory for tpu_custom_call.1']
    #allocation4 [shape = 's32[2]{0}', space=sflag, size = 0x8, scoped, tag = 'scoped memory for tpu_custom_call.1']
    #allocation5 [shape = 'u8[8192]{0}', space=vmem, size = 0x2000, scoped, tag = 'input window, operand 1, single buffered']
    #allocation6 [shape = 's32[1]{0}', space=sflag, size = 0x4, scoped, tag = 'scoped memory for tpu_custom_call.1']
    #allocation7 [shape = 'u8[65536]{0}', space=vmem, size = 0x10000, scoped, tag = 'output window, operand 0']
    %8 = vsyncpa [#allocation3], 0
    %s9 = scalar_lea.sflag [#allocation3], 1
    %10 = vsyncpa %s9, 0
    %11 = vsyncpa [#allocation6], 0
    %12 = vsyncpa [#allocation4], 0
    %s13 = scalar_lea.sflag [#allocation4], 1
    %14 = vsyncpa %s13, 0
    loop: start=0, step=1, limit=4
    $region2: #{tpu_custom_call.1} parent=1 // loop_pre_header
      _
    $region3: #{tpu_custom_call.1} parent=1 // loop_header
      %s16 = sphi 0, %s20
      %p17 = scmp.ge.s32.totalorder %s16, 4
      %s23 = sphi 0, %s35
      %s24 = sphi 0, %s31
      %s25 = sphi 0, %s23
      %s26 = sphi 0, %s24
      %s27 = sphi 0, %s25
      %s28 = sphi 0, %s26
      %s40 = sphi 0, %s42
      %s43 = sphi 0, %s40
      %s44 = sphi 0, %s43
      %s60 = sphi 0, %s44
      %s64 = sphi 0, %s64
      %s66 = sphi 0, %s64
      %s67 = sphi 0, %s66
      %s81 = sphi 0, %s67
      %s85 = sphi 0, %s85
      %s87 = sphi 0, %s85
      %s88 = sphi 0, %s87
      %s102 = sphi 0, %s88
      %s110 = sphi 0, %s112
      %s113 = sphi 0, %s110
      %s114 = sphi 0, %s113
      %s130 = sphi 0, %s114
    $region4: #{tpu_custom_call.1} parent=1 // loop_header_branch
      %19 = sbr.rel (%p17) target = $region8
    $region5: #{tpu_custom_call.1} parent=1 // loop_body
      %s21 = ssub.s32 %s16, 1
      %s22 = ssub.s32 %s16, 2
      %s29 = sadd.s32 1, %s24
      %p30 = scmp.ge.s32.totalorder %s29, 1
      %s31 = scalar_select %p30, 0, %s29
      %s32 = sadd.s32 1, %s23
      %s33 = scalar_select %p30, %s32, %s23
      %p34 = scmp.ge.s32.totalorder %s33, 2
      %s35 = scalar_select %p34, 0, %s33
      %s36 = ssub.s32 %s23, %s35
      %s37 = ssub.s32 %s24, %s31
      %s38 = sor.u32 %s36, %s37
      %p39 = scmp.eq.s32.totalorder %s38, 0
      %s41 = sadd.s32 %s40, 1
      %s42 = scalar_select %p39, %s40, %s41
      %p45 = pneg %p39
      %p46 = scmp.eq.s32.totalorder %s16, 1
      %p47 = por %p45, %p46
      %p48 = scmp.ne.s32.totalorder %s40, %s43
      %p49 = scmp.eq.s32.totalorder %s16, 0
      %p50 = por %p48, %p49
      %p51 = scmp.ne.s32.totalorder %s40, %s43
      %p52 = scmp.eq.s32.totalorder %s21, 1
      %p53 = por %p51, %p52
      %p54 = scmp.ne.s32.totalorder %s43, %s44
      %p55 = scmp.eq.s32.totalorder %s21, 0
      %p56 = por %p54, %p55
      %p57 = scmp.ne.s32.totalorder %s43, %s44
      %p58 = scmp.eq.s32.totalorder %s22, 1
      %p59 = por %p57, %p58
      %p61 = scmp.ne.s32.totalorder %s44, %s60
      %p62 = scmp.eq.s32.totalorder %s22, 0
      %p63 = por %p61, %p62
      %s65 = sadd.s32 %s64, 1
      %p68 = scmp.eq.s32.totalorder %s16, 1
      %p69 = scmp.ne.s32.totalorder %s64, %s66
      %p70 = scmp.eq.s32.totalorder %s16, 0
      %p71 = por %p69, %p70
      %p72 = scmp.ne.s32.totalorder %s64, %s66
      %p73 = scmp.eq.s32.totalorder %s21, 1
      %p74 = por %p72, %p73
      %p75 = scmp.ne.s32.totalorder %s66, %s67
      %p76 = scmp.eq.s32.totalorder %s21, 0
      %p77 = por %p75, %p76
      %p78 = scmp.ne.s32.totalorder %s66, %s67
      %p79 = scmp.eq.s32.totalorder %s22, 1
      %p80 = por %p78, %p79
      %p82 = scmp.ne.s32.totalorder %s67, %s81
      %p83 = scmp.eq.s32.totalorder %s22, 0
      %p84 = por %p82, %p83
      %s86 = sadd.s32 %s85, 1
      %p89 = scmp.eq.s32.totalorder %s16, 1
      %p90 = scmp.ne.s32.totalorder %s85, %s87
      %p91 = scmp.eq.s32.totalorder %s16, 0
      %p92 = por %p90, %p91
      %p93 = scmp.ne.s32.totalorder %s85, %s87
      %p94 = scmp.eq.s32.totalorder %s21, 1
      %p95 = por %p93, %p94
      %p96 = scmp.ne.s32.totalorder %s87, %s88
      %p97 = scmp.eq.s32.totalorder %s21, 0
      %p98 = por %p96, %p97
      %p99 = scmp.ne.s32.totalorder %s87, %s88
      %p100 = scmp.eq.s32.totalorder %s22, 1
      %p101 = por %p99, %p100
      %p103 = scmp.ne.s32.totalorder %s88, %s102
      %p104 = scmp.eq.s32.totalorder %s22, 0
      %p105 = por %p103, %p104
      %s106 = ssub.s32 %s23, %s35
      %s107 = ssub.s32 %s24, %s31
      %s108 = sor.u32 %s106, %s107
      %p109 = scmp.eq.s32.totalorder %s108, 0
      %s111 = sadd.s32 %s110, 1
      %s112 = scalar_select %p109, %s110, %s111
      %p115 = pneg %p109
      %p116 = scmp.eq.s32.totalorder %s16, 1
      %p117 = por %p115, %p116
      %p118 = scmp.ne.s32.totalorder %s110, %s113
      %p119 = scmp.eq.s32.totalorder %s16, 0
      %p120 = por %p118, %p119
      %p121 = scmp.ne.s32.totalorder %s110, %s113
      %p122 = scmp.eq.s32.totalorder %s21, 1
      %p123 = por %p121, %p122
      %p124 = scmp.ne.s32.totalorder %s113, %s114
      %p125 = scmp.eq.s32.totalorder %s21, 0
      %p126 = por %p124, %p125
      %p127 = scmp.ne.s32.totalorder %s113, %s114
      %p128 = scmp.eq.s32.totalorder %s22, 1
      %p129 = por %p127, %p128
      %p131 = scmp.ne.s32.totalorder %s114, %s130
      %p132 = scmp.eq.s32.totalorder %s22, 0
      %p133 = por %p131, %p132
      %p134 = scmp.le.s32.totalorder 1, %s16
      %p135 = scmp.lt.s32.totalorder %s16, 3
      %p136 = pnand %p134, %p135
      %p137 = pneg %p136
      // Predicated region
      $region9: #{tpu_custom_call.1} parent=5 // pred_check
        _
      $region10: #{tpu_custom_call.1} parent=5 // pred_check_branch
        %139 = sbr.rel (%p136) target = $region12
      $region11: #{tpu_custom_call.1} parent=5 // pred_region
        %s140 = ssub.s32 %s16, 1
        // Predicated region
        $region13: #{tpu_custom_call.1} parent=11 // pred_check
          %p141 = pneg %p77
        $region14: #{tpu_custom_call.1} parent=11 // pred_check_branch
          %143 = sbr.rel (%p141) target = $region16
        $region15: #{tpu_custom_call.1} parent=11 // pred_region
          %s145 = ssub.s32 256, 256
          %146 = vsyncadd [#allocation6], %s145
          %s147 = sshll.u32 [#allocation5], 4
          %s148 = int_to_ptr.vmem [resolvable:$true] %s147
          %153 = dma.hbm_to_vmem [thread:$0]  %s1, 256, %s148, [#allocation6], 128, 128, 8
        $region16: #{tpu_custom_call.1} parent=11 // pred_fallthru
          _
        // Predicated region
        $region17: #{tpu_custom_call.1} parent=11 // pred_check
          %p154 = pneg %p98
        $region18: #{tpu_custom_call.1} parent=11 // pred_check_branch
          %156 = sbr.rel (%p154) target = $region20
        $region19: #{tpu_custom_call.1} parent=11 // pred_region
          _
        $region20: #{tpu_custom_call.1} parent=11 // pred_fallthru
          _
      $region12: #{tpu_custom_call.1} parent=5 // pred_fallthru
        _
      %p157 = scmp.lt.s32.totalorder %s16, 2
      // Predicated region
      $region21: #{tpu_custom_call.1} parent=5 // pred_check
        %p158 = pneg %p157
      $region22: #{tpu_custom_call.1} parent=5 // pred_check_branch
        %160 = sbr.rel (%p158) target = $region24
      $region23: #{tpu_custom_call.1} parent=5 // pred_region
        // Predicated region
        $region25: #{tpu_custom_call.1} parent=23 // pred_check
          %p161 = pneg %p50
        $region26: #{tpu_custom_call.1} parent=23 // pred_check_branch
          %163 = sbr.rel (%p161) target = $region28
        $region27: #{tpu_custom_call.1} parent=23 // pred_region
          %s164 = sand.u32 %s40, 1
          %s165 = scalar_lea.sflag [#allocation3], %s164
          %s166 = sand.u32 %s40, 1
          %s167 = smul.addr %s166, 16
          %s168 = scalar_lea.vmem [#allocation2], %s167
          %s170 = ssub.s32 256, 256
          %171 = vsyncadd %s165, %s170
          %s172 = smul.addr %s23, 2
          %s173 = sadd.s32 %s24, %s172
          %s174 = smul.addr %s173, 128
          %s175 = scalar_lea.hbm %s0, %s174
          %s176 = sshll.u32 %s168, 4
          %s177 = int_to_ptr.vmem [resolvable:$true] %s176
          %182 = dma.hbm_to_vmem [thread:$0]  %s175, 256, %s177, %s165, 128, 128, 8
        $region28: #{tpu_custom_call.1} parent=23 // pred_fallthru
          _
      $region24: #{tpu_custom_call.1} parent=5 // pred_fallthru
        _
      %p183 = scmp.le.s32.totalorder 1, %s16
      %p184 = scmp.lt.s32.totalorder %s16, 3
      %p185 = pnand %p183, %p184
      %p186 = pneg %p185
      // Predicated region
      $region29: #{tpu_custom_call.1} parent=5 // pred_check
        _
      $region30: #{tpu_custom_call.1} parent=5 // pred_check_branch
        %188 = sbr.rel (%p185) target = $region32
      $region31: #{tpu_custom_call.1} parent=5 // pred_region
        %s189 = ssub.s32 %s16, 1
        %s190 = sand.u32 %s43, 1
        %s191 = scalar_lea.sflag [#allocation3], %s190
        %s192 = sand.u32 %s43, 1
        %s193 = smul.addr %s192, 16
        %s194 = scalar_lea.vmem [#allocation2], %s193
        // Predicated region
        $region33: #{tpu_custom_call.1} parent=31 // pred_check
          %p195 = pneg %p56
        $region34: #{tpu_custom_call.1} parent=31 // pred_check_branch
          %197 = sbr.rel (%p195) target = $region36
        $region35: #{tpu_custom_call.1} parent=31 // pred_region
          %198 = dma.done %s191, 256
        $region36: #{tpu_custom_call.1} parent=31 // pred_fallthru
          _
        // Predicated region
        $region37: #{tpu_custom_call.1} parent=31 // pred_check
          %p199 = pneg %p77
        $region38: #{tpu_custom_call.1} parent=31 // pred_check_branch
          %201 = sbr.rel (%p199) target = $region40
        $region39: #{tpu_custom_call.1} parent=31 // pred_region
          %202 = dma.done [#allocation6], 256
        $region40: #{tpu_custom_call.1} parent=31 // pred_fallthru
          _
        %s203 = sand.u32 %s43, 1
        %s204 = scalar_lea.sflag [#allocation3], %s203
        %s205 = sand.u32 %s43, 1
        %s206 = smul.addr %s205, 16
        %s207 = scalar_lea.vmem [#allocation2], %s206
        %p208 = pneg %p56
        %p209 = pneg %p53
        %p210 = pneg %p77
        %p211 = pneg %p74
        %p212 = pneg %p98
        %p213 = pneg %p95
        %p214 = pneg %p126
        %p215 = pneg %p123
        %s216 = sand.u32 %s113, 1
        %s217 = scalar_lea.sflag [#allocation4], %s216
        %s218 = sand.u32 %s113, 1
        %s219 = smul.addr %s218, 64
        %s220 = scalar_lea.vmem [#allocation7], %s219
        %s221 = smul.u32 8, %s26
        %v222 = vld [vmem:[%s194] sm:$0xff]
        %v223 = vld [vmem:[%s194 + $0x8] sm:$0xff]
        %v224 = vld [vmem:[#allocation5] sm:$0xff]
        %v225 = vld [vmem:[#allocation5 + $0x8] sm:$0xff]
        %v226 = vld [vmem:[%s2] sm:$0x1]
        %v228 = vlaneseq
        %v229 = vshrl.u32 %v228, 7
        %v230 = vsub.s32 0, %v229
        %v231 = vrot.slane %v226, %v230
        %233 = vxpose.xlu0.b32.start [1/16] %v222, 128
        %234 = vxpose.xlu0.b32.cont [2/16] %v223, 128
        %235 = vxpose.xlu0.b32.cont [3/16] 0.0, 128
        %236 = vxpose.xlu0.b32.cont [4/16] 0.0, 128
        %237 = vxpose.xlu0.b32.cont [5/16] 0.0, 128
        %238 = vxpose.xlu0.b32.cont [6/16] 0.0, 128
        %239 = vxpose.xlu0.b32.cont [7/16] 0.0, 128
        %240 = vxpose.xlu0.b32.cont [8/16] 0.0, 128
        %241 = vxpose.xlu0.b32.cont [9/16] 0.0, 128
        %242 = vxpose.xlu0.b32.cont [10/16] 0.0, 128
        %243 = vxpose.xlu0.b32.cont [11/16] 0.0, 128
        %244 = vxpose.xlu0.b32.cont [12/16] 0.0, 128
        %245 = vxpose.xlu0.b32.cont [13/16] 0.0, 128
        %246 = vxpose.xlu0.b32.cont [14/16] 0.0, 128
        %247 = vxpose.xlu0.b32.cont [15/16] 0.0, 128
        %248 = vxpose.xlu0.b32.end [16/16] 0.0, 128
        %v249 = vpop.trf.xlu0
        %v250 = vpop.trf.xlu0
        %v251 = vpop.trf.xlu0
        %v252 = vpop.trf.xlu0
        %v253 = vpop.trf.xlu0
        %v254 = vpop.trf.xlu0
        %v255 = vpop.trf.xlu0
        %v256 = vpop.trf.xlu0
        %v257 = vpop.trf.xlu0
        %v258 = vpop.trf.xlu0
        %v259 = vpop.trf.xlu0
        %v260 = vpop.trf.xlu0
        %v261 = vpop.trf.xlu0
        %v262 = vpop.trf.xlu0
        %v263 = vpop.trf.xlu0
        %v264 = vpop.trf.xlu0
        %vm265 = vcmask 130048
        %v267 = vsel %vm265, %v249, 0
        %v270 = vsel %vm265, %v250, 0
        %v273 = vsel %vm265, %v251, 0
        %v276 = vsel %vm265, %v252, 0
        %v279 = vsel %vm265, %v253, 0
        %v282 = vsel %vm265, %v254, 0
        %v285 = vsel %vm265, %v255, 0
        %v288 = vsel %vm265, %v256, 0
        %290 = vmatprep.subr.mxu0 0.0
        %v291 = vand.u32 %v224, 4294901760
        %292 = vmatpush1.msra.mxu0 %v291
        %293 = vmatprep.subr.mxu0 0.0
        %v294 = vand.u32 %v225, 4294901760
        %295 = vmatpush1.msra.mxu0 %v294
        %296 = vmatprep.subr.mxu0 0.0
        %297 = vmatpush1.msra.mxu0 0.0
        %298 = vmatprep.subr.mxu0 0.0
        %299 = vmatpush1.msra.mxu0 0.0
        %300 = vmatprep.subr.mxu0 0.0
        %301 = vmatpush1.msra.mxu0 0.0
        %302 = vmatprep.subr.mxu0 0.0
        %303 = vmatpush1.msra.mxu0 0.0
        %304 = vmatprep.subr.mxu0 0.0
        %305 = vmatpush1.msra.mxu0 0.0
        %306 = vmatprep.subr.mxu0 0.0
        %307 = vmatpush1.msra.mxu0 0.0
        %308 = vmatprep.subr.mxu0 0.0
        %309 = vmatpush1.msra.mxu0 0.0
        %310 = vmatprep.subr.mxu0 0.0
        %311 = vmatpush1.msra.mxu0 0.0
        %312 = vmatprep.subr.mxu0 0.0
        %313 = vmatpush1.msra.mxu0 0.0
        %314 = vmatprep.subr.mxu0 0.0
        %315 = vmatpush1.msra.mxu0 0.0
        %316 = vmatprep.subr.mxu0 0.0
        %317 = vmatpush1.msra.mxu0 0.0
        %318 = vmatprep.subr.mxu0 0.0
        %319 = vmatpush1.msra.mxu0 0.0
        %320 = vmatprep.subr.mxu0 0.0
        %321 = vmatpush1.msra.mxu0 0.0
        %322 = vmatprep.subr.mxu0 0.0
        %323 = vmatpush1.msra.mxu0 0.0
        %324 = vmatprep.subr.mxu0 0.0
        %325 = vmatpush1.msra.mxu0 0.0
        %326 = vmatprep.subr.mxu0 0.0
        %327 = vmatpush1.msra.mxu0 0.0
        %328 = vmatprep.subr.mxu0 0.0
        %329 = vmatpush1.msra.mxu0 0.0
        %330 = vmatprep.subr.mxu0 0.0
        %331 = vmatpush1.msra.mxu0 0.0
        %332 = vmatprep.subr.mxu0 0.0
        %333 = vmatpush1.msra.mxu0 0.0
        %334 = vmatprep.subr.mxu0 0.0
        %335 = vmatpush1.msra.mxu0 0.0
        %336 = vmatprep.subr.mxu0 0.0
        %337 = vmatpush1.msra.mxu0 0.0
        %338 = vmatprep.subr.mxu0 0.0
        %339 = vmatpush1.msra.mxu0 0.0
        %340 = vmatprep.subr.mxu0 0.0
        %341 = vmatpush1.msra.mxu0 0.0
        %342 = vmatprep.subr.mxu0 0.0
        %343 = vmatpush1.msra.mxu0 0.0
        %344 = vmatprep.subr.mxu0 0.0
        %345 = vmatpush1.msra.mxu0 0.0
        %346 = vmatprep.subr.mxu0 0.0
        %347 = vmatpush1.msra.mxu0 0.0
        %348 = vmatprep.subr.mxu0 0.0
        %349 = vmatpush1.msra.mxu0 0.0
        %350 = vmatprep.subr.mxu0 0.0
        %351 = vmatpush1.msra.mxu0 0.0
        %352 = vmatprep.subr.mxu0 0.0
        %353 = vmatpush1.msra.mxu0 0.0
        %354 = vmatprep.subr.mxu0 0.0
        %355 = vmatpush1.msra.mxu0 0.0
        %356 = vmatprep.mubr.f32.mxu0 0.0
        %v357 = vand.u32 %v267, 4294901760
        %v358 = vsub.f32 %v267, %v357
        %v359 = vand.u32 %v358, 4294901760
        %v360 = vsub.f32 %v358, %v359
        %v361 = vand.u32 %v360, 4294901760
        %362 = vmatmul.mubr.f32.gmra.mrb[0].mxu0 %v361
        %v363 = vpop.f32.mrb[0].mxu0
        %v364 = vadd.f32 %v231, %v363
        %v365 = vpop.f32.mrb[0].mxu0
        %366 = vmatprep.mubr.f32.mxu0 0.0
        %v367 = vand.u32 %v270, 4294901760
        %v368 = vsub.f32 %v270, %v367
        %v369 = vand.u32 %v368, 4294901760
        %v370 = vsub.f32 %v368, %v369
        %v371 = vand.u32 %v370, 4294901760
        %372 = vmatmul.mubr.f32.gmra.mrb[0].mxu0 %v371
        %v373 = vpop.f32.mrb[0].mxu0
        %v374 = vadd.f32 %v231, %v373
        %v375 = vpop.f32.mrb[0].mxu0
        %376 = vmatprep.mubr.f32.mxu0 0.0
        %v377 = vand.u32 %v273, 4294901760
        %v378 = vsub.f32 %v273, %v377
        %v379 = vand.u32 %v378, 4294901760
        %v380 = vsub.f32 %v378, %v379
        %v381 = vand.u32 %v380, 4294901760
        %382 = vmatmul.mubr.f32.gmra.mrb[0].mxu0 %v381
        %v383 = vpop.f32.mrb[0].mxu0
        %v384 = vadd.f32 %v231, %v383
        %v385 = vpop.f32.mrb[0].mxu0
        %386 = vmatprep.mubr.f32.mxu0 0.0
        %v387 = vand.u32 %v276, 4294901760
        %v388 = vsub.f32 %v276, %v387
        %v389 = vand.u32 %v388, 4294901760
        %v390 = vsub.f32 %v388, %v389
        %v391 = vand.u32 %v390, 4294901760
        %392 = vmatmul.mubr.f32.gmra.mrb[0].mxu0 %v391
        %v393 = vpop.f32.mrb[0].mxu0
        %v394 = vadd.f32 %v231, %v393
        %v395 = vpop.f32.mrb[0].mxu0
        %396 = vmatprep.mubr.f32.mxu0 0.0
        %v397 = vand.u32 %v279, 4294901760
        %v398 = vsub.f32 %v279, %v397
        %v399 = vand.u32 %v398, 4294901760
        %v400 = vsub.f32 %v398, %v399
        %v401 = vand.u32 %v400, 4294901760
        %402 = vmatmul.mubr.f32.gmra.mrb[0].mxu0 %v401
        %v403 = vpop.f32.mrb[0].mxu0
        %v404 = vadd.f32 %v231, %v403
        %v405 = vpop.f32.mrb[0].mxu0
        %406 = vmatprep.mubr.f32.mxu0 0.0
        %v407 = vand.u32 %v282, 4294901760
        %v408 = vsub.f32 %v282, %v407
        %v409 = vand.u32 %v408, 4294901760
        %v410 = vsub.f32 %v408, %v409
        %v411 = vand.u32 %v410, 4294901760
        %412 = vmatmul.mubr.f32.gmra.mrb[0].mxu0 %v411
        %v413 = vpop.f32.mrb[0].mxu0
        %v414 = vadd.f32 %v231, %v413
        %v415 = vpop.f32.mrb[0].mxu0
        %416 = vmatprep.mubr.f32.mxu0 0.0
        %v417 = vand.u32 %v285, 4294901760
        %v418 = vsub.f32 %v285, %v417
        %v419 = vand.u32 %v418, 4294901760
        %v420 = vsub.f32 %v418, %v419
        %v421 = vand.u32 %v420, 4294901760
        %422 = vmatmul.mubr.f32.gmra.mrb[0].mxu0 %v421
        %v423 = vpop.f32.mrb[0].mxu0
        %v424 = vadd.f32 %v231, %v423
        %v425 = vpop.f32.mrb[0].mxu0
        %426 = vmatprep.mubr.f32.mxu0 0.0
        %v427 = vand.u32 %v288, 4294901760
        %v428 = vsub.f32 %v288, %v427
        %v429 = vand.u32 %v428, 4294901760
        %v430 = vsub.f32 %v428, %v429
        %v431 = vand.u32 %v430, 4294901760
        %432 = vmatmul.mubr.f32.gmra.mrb[0].mxu0 %v431
        %v433 = vpop.f32.mrb[0].mxu0
        %v434 = vadd.f32 %v231, %v433
        %v435 = vpop.f32.mrb[0].mxu0
        %436 = vdwg.mxu0
        %437 = vmatprep.subr.mxu0 0.0
        %v438 = vand.u32 %v224, 4294901760
        %v439 = vsub.f32 %v224, %v438
        %v440 = vand.u32 %v439, 4294901760
        %v441 = vsub.f32 %v439, %v440
        %v442 = vand.u32 %v441, 4294901760
        %443 = vmatpush1.msra.mxu0 %v442
        %444 = vmatprep.subr.mxu0 0.0
        %v445 = vand.u32 %v225, 4294901760
        %v446 = vsub.f32 %v225, %v445
        %v447 = vand.u32 %v446, 4294901760
        %v448 = vsub.f32 %v446, %v447
        %v449 = vand.u32 %v448, 4294901760
        %450 = vmatpush1.msra.mxu0 %v449
        %451 = vmatprep.subr.mxu0 0.0
        %452 = vmatpush1.msra.mxu0 0.0
        %453 = vmatprep.subr.mxu0 0.0
        %454 = vmatpush1.msra.mxu0 0.0
        %455 = vmatprep.subr.mxu0 0.0
        %456 = vmatpush1.msra.mxu0 0.0
        %457 = vmatprep.subr.mxu0 0.0
        %458 = vmatpush1.msra.mxu0 0.0
        %459 = vmatprep.subr.mxu0 0.0
        %460 = vmatpush1.msra.mxu0 0.0
        %461 = vmatprep.subr.mxu0 0.0
        %462 = vmatpush1.msra.mxu0 0.0
        %463 = vmatprep.subr.mxu0 0.0
        %464 = vmatpush1.msra.mxu0 0.0
        %465 = vmatprep.subr.mxu0 0.0
        %466 = vmatpush1.msra.mxu0 0.0
        %467 = vmatprep.subr.mxu0 0.0
        %468 = vmatpush1.msra.mxu0 0.0
        %469 = vmatprep.subr.mxu0 0.0
        %470 = vmatpush1.msra.mxu0 0.0
        %471 = vmatprep.subr.mxu0 0.0
        %472 = vmatpush1.msra.mxu0 0.0
        %473 = vmatprep.subr.mxu0 0.0
        %474 = vmatpush1.msra.mxu0 0.0
        %475 = vmatprep.subr.mxu0 0.0
        %476 = vmatpush1.msra.mxu0 0.0
        %477 = vmatprep.subr.mxu0 0.0
        %478 = vmatpush1.msra.mxu0 0.0
        %479 = vmatprep.subr.mxu0 0.0
        %480 = vmatpush1.msra.mxu0 0.0
        %481 = vmatprep.subr.mxu0 0.0
        %482 = vmatpush1.msra.mxu0 0.0
        %483 = vmatprep.subr.mxu0 0.0
        %484 = vmatpush1.msra.mxu0 0.0
        %485 = vmatprep.subr.mxu0 0.0
        %486 = vmatpush1.msra.mxu0 0.0
        %487 = vmatprep.subr.mxu0 0.0
        %488 = vmatpush1.msra.mxu0 0.0
        %489 = vmatprep.subr.mxu0 0.0
        %490 = vmatpush1.msra.mxu0 0.0
        %491 = vmatprep.subr.mxu0 0.0
        %492 = vmatpush1.msra.mxu0 0.0
        %493 = vmatprep.subr.mxu0 0.0
        %494 = vmatpush1.msra.mxu0 0.0
        %495 = vmatprep.subr.mxu0 0.0
        %496 = vmatpush1.msra.mxu0 0.0
        %497 = vmatprep.subr.mxu0 0.0
        %498 = vmatpush1.msra.mxu0 0.0
        %499 = vmatprep.subr.mxu0 0.0
        %500 = vmatpush1.msra.mxu0 0.0
        %501 = vmatprep.subr.mxu0 0.0
        %502 = vmatpush1.msra.mxu0 0.0
        %503 = vmatprep.subr.mxu0 0.0
        %504 = vmatpush1.msra.mxu0 0.0
        %505 = vmatprep.subr.mxu0 0.0
        %506 = vmatpush1.msra.mxu0 0.0
        %507 = vmatprep.subr.mxu0 0.0
        %508 = vmatpush1.msra.mxu0 0.0
        %509 = vmatprep.subr.mxu0 0.0
        %510 = vmatpush1.msra.mxu0 0.0
        %511 = vmatprep.mubr.f32.mxu0 0.0
        %v512 = vand.u32 %v267, 4294901760
        %513 = vmatmul.mubr.f32.gmra.mrb[0].mxu0 %v512
        %v514 = vpop.f32.mrb[0].mxu0
        %v515 = vadd.f32 %v364, %v514
        %v516 = vpop.f32.mrb[0].mxu0
        %517 = vmatprep.mubr.f32.mxu0 0.0
        %v518 = vand.u32 %v270, 4294901760
        %519 = vmatmul.mubr.f32.gmra.mrb[0].mxu0 %v518
        %v520 = vpop.f32.mrb[0].mxu0
        %v521 = vadd.f32 %v374, %v520
        %v522 = vpop.f32.mrb[0].mxu0
        %523 = vmatprep.mubr.f32.mxu0 0.0
        %v524 = vand.u32 %v273, 4294901760
        %525 = vmatmul.mubr.f32.gmra.mrb[0].mxu0 %v524
        %v526 = vpop.f32.mrb[0].mxu0
        %v527 = vadd.f32 %v384, %v526
        %v528 = vpop.f32.mrb[0].mxu0
        %529 = vmatprep.mubr.f32.mxu0 0.0
        %v530 = vand.u32 %v276, 4294901760
        %531 = vmatmul.mubr.f32.gmra.mrb[0].mxu0 %v530
        %v532 = vpop.f32.mrb[0].mxu0
        %v533 = vadd.f32 %v394, %v532
        %v534 = vpop.f32.mrb[0].mxu0
        %535 = vmatprep.mubr.f32.mxu0 0.0
        %v536 = vand.u32 %v279, 4294901760
        %537 = vmatmul.mubr.f32.gmra.mrb[0].mxu0 %v536
        %v538 = vpop.f32.mrb[0].mxu0
        %v539 = vadd.f32 %v404, %v538
        %v540 = vpop.f32.mrb[0].mxu0
        %541 = vmatprep.mubr.f32.mxu0 0.0
        %v542 = vand.u32 %v282, 4294901760
        %543 = vmatmul.mubr.f32.gmra.mrb[0].mxu0 %v542
        %v544 = vpop.f32.mrb[0].mxu0
        %v545 = vadd.f32 %v414, %v544
        %v546 = vpop.f32.mrb[0].mxu0
        %547 = vmatprep.mubr.f32.mxu0 0.0
        %v548 = vand.u32 %v285, 4294901760
        %549 = vmatmul.mubr.f32.gmra.mrb[0].mxu0 %v548
        %v550 = vpop.f32.mrb[0].mxu0
        %v551 = vadd.f32 %v424, %v550
        %v552 = vpop.f32.mrb[0].mxu0
        %553 = vmatprep.mubr.f32.mxu0 0.0
        %v554 = vand.u32 %v288, 4294901760
        %555 = vmatmul.mubr.f32.gmra.mrb[0].mxu0 %v554
        %v556 = vpop.f32.mrb[0].mxu0
        %v557 = vadd.f32 %v434, %v556
        %v558 = vpop.f32.mrb[0].mxu0
        %559 = vdwg.mxu0
        %560 = vmatprep.subr.mxu0 0.0
        %v561 = vand.u32 %v224, 4294901760
        %v562 = vsub.f32 %v224, %v561
        %563 = vmatpush1.msra.mxu0 %v562
        %564 = vmatprep.subr.mxu0 0.0
        %v565 = vand.u32 %v225, 4294901760
        %v566 = vsub.f32 %v225, %v565
        %567 = vmatpush1.msra.mxu0 %v566
        %568 = vmatprep.subr.mxu0 0.0
        %569 = vmatpush1.msra.mxu0 0.0
        %570 = vmatprep.subr.mxu0 0.0
        %571 = vmatpush1.msra.mxu0 0.0
        %572 = vmatprep.subr.mxu0 0.0
        %573 = vmatpush1.msra.mxu0 0.0
        %574 = vmatprep.subr.mxu0 0.0
        %575 = vmatpush1.msra.mxu0 0.0
        %576 = vmatprep.subr.mxu0 0.0
        %577 = vmatpush1.msra.mxu0 0.0
        %578 = vmatprep.subr.mxu0 0.0
        %579 = vmatpush1.msra.mxu0 0.0
        %580 = vmatprep.subr.mxu0 0.0
        %581 = vmatpush1.msra.mxu0 0.0
        %582 = vmatprep.subr.mxu0 0.0
        %583 = vmatpush1.msra.mxu0 0.0
        %584 = vmatprep.subr.mxu0 0.0
        %585 = vmatpush1.msra.mxu0 0.0
        %586 = vmatprep.subr.mxu0 0.0
        %587 = vmatpush1.msra.mxu0 0.0
        %588 = vmatprep.subr.mxu0 0.0
        %589 = vmatpush1.msra.mxu0 0.0
        %590 = vmatprep.subr.mxu0 0.0
        %591 = vmatpush1.msra.mxu0 0.0
        %592 = vmatprep.subr.mxu0 0.0
        %593 = vmatpush1.msra.mxu0 0.0
        %594 = vmatprep.subr.mxu0 0.0
        %595 = vmatpush1.msra.mxu0 0.0
        %596 = vmatprep.subr.mxu0 0.0
        %597 = vmatpush1.msra.mxu0 0.0
        %598 = vmatprep.subr.mxu0 0.0
        %599 = vmatpush1.msra.mxu0 0.0
        %600 = vmatprep.subr.mxu0 0.0
        %601 = vmatpush1.msra.mxu0 0.0
        %602 = vmatprep.subr.mxu0 0.0
        %603 = vmatpush1.msra.mxu0 0.0
        %604 = vmatprep.subr.mxu0 0.0
        %605 = vmatpush1.msra.mxu0 0.0
        %606 = vmatprep.subr.mxu0 0.0
        %607 = vmatpush1.msra.mxu0 0.0
        %608 = vmatprep.subr.mxu0 0.0
        %609 = vmatpush1.msra.mxu0 0.0
        %610 = vmatprep.subr.mxu0 0.0
        %611 = vmatpush1.msra.mxu0 0.0
        %612 = vmatprep.subr.mxu0 0.0
        %613 = vmatpush1.msra.mxu0 0.0
        %614 = vmatprep.subr.mxu0 0.0
        %615 = vmatpush1.msra.mxu0 0.0
        %616 = vmatprep.subr.mxu0 0.0
        %617 = vmatpush1.msra.mxu0 0.0
        %618 = vmatprep.subr.mxu0 0.0
        %619 = vmatpush1.msra.mxu0 0.0
        %620 = vmatprep.subr.mxu0 0.0
        %621 = vmatpush1.msra.mxu0 0.0
        %622 = vmatprep.subr.mxu0 0.0
        %623 = vmatpush1.msra.mxu0 0.0
        %624 = vmatprep.subr.mxu0 0.0
        %625 = vmatpush1.msra.mxu0 0.0
        %626 = vmatprep.subr.mxu0 0.0
        %627 = vmatpush1.msra.mxu0 0.0
        %628 = vmatprep.mubr.f32.mxu0 0.0
        %v629 = vand.u32 %v267, 4294901760
        %v630 = vsub.f32 %v267, %v629
        %631 = vmatmul.mubr.f32.gmra.mrb[0].mxu0 %v630
        %v632 = vpop.f32.mrb[0].mxu0
        %v633 = vadd.f32 %v515, %v632
        %v634 = vpop.f32.mrb[0].mxu0
        %635 = vmatprep.mubr.f32.mxu0 0.0
        %v636 = vand.u32 %v270, 4294901760
        %v637 = vsub.f32 %v270, %v636
        %638 = vmatmul.mubr.f32.gmra.mrb[0].mxu0 %v637
        %v639 = vpop.f32.mrb[0].mxu0
        %v640 = vadd.f32 %v521, %v639
        %v641 = vpop.f32.mrb[0].mxu0
        %642 = vmatprep.mubr.f32.mxu0 0.0
        %v643 = vand.u32 %v273, 4294901760
        %v644 = vsub.f32 %v273, %v643
        %645 = vmatmul.mubr.f32.gmra.mrb[0].mxu0 %v644
        %v646 = vpop.f32.mrb[0].mxu0
        %v647 = vadd.f32 %v527, %v646
        %v648 = vpop.f32.mrb[0].mxu0
        %649 = vmatprep.mubr.f32.mxu0 0.0
        %v650 = vand.u32 %v276, 4294901760
        %v651 = vsub.f32 %v276, %v650
        %652 = vmatmul.mubr.f32.gmra.mrb[0].mxu0 %v651
        %v653 = vpop.f32.mrb[0].mxu0
        %v654 = vadd.f32 %v533, %v653
        %v655 = vpop.f32.mrb[0].mxu0
        %656 = vmatprep.mubr.f32.mxu0 0.0
        %v657 = vand.u32 %v279, 4294901760
        %v658 = vsub.f32 %v279, %v657
        %659 = vmatmul.mubr.f32.gmra.mrb[0].mxu0 %v658
        %v660 = vpop.f32.mrb[0].mxu0
        %v661 = vadd.f32 %v539, %v660
        %v662 = vpop.f32.mrb[0].mxu0
        %663 = vmatprep.mubr.f32.mxu0 0.0
        %v664 = vand.u32 %v282, 4294901760
        %v665 = vsub.f32 %v282, %v664
        %666 = vmatmul.mubr.f32.gmra.mrb[0].mxu0 %v665
        %v667 = vpop.f32.mrb[0].mxu0
        %v668 = vadd.f32 %v545, %v667
        %v669 = vpop.f32.mrb[0].mxu0
        %670 = vmatprep.mubr.f32.mxu0 0.0
        %v671 = vand.u32 %v285, 4294901760
        %v672 = vsub.f32 %v285, %v671
        %673 = vmatmul.mubr.f32.gmra.mrb[0].mxu0 %v672
        %v674 = vpop.f32.mrb[0].mxu0
        %v675 = vadd.f32 %v551, %v674
        %v676 = vpop.f32.mrb[0].mxu0
        %677 = vmatprep.mubr.f32.mxu0 0.0
        %v678 = vand.u32 %v288, 4294901760
        %v679 = vsub.f32 %v288, %v678
        %680 = vmatmul.mubr.f32.gmra.mrb[0].mxu0 %v679
        %v681 = vpop.f32.mrb[0].mxu0
        %v682 = vadd.f32 %v557, %v681
        %v683 = vpop.f32.mrb[0].mxu0
        %684 = vdwg.mxu0
        %685 = vmatprep.subr.mxu0 0.0
        %v686 = vand.u32 %v224, 4294901760
        %687 = vmatpush1.msra.mxu0 %v686
        %688 = vmatprep.subr.mxu0 0.0
        %v689 = vand.u32 %v225, 4294901760
        %690 = vmatpush1.msra.mxu0 %v689
        %691 = vmatprep.subr.mxu0 0.0
        %692 = vmatpush1.msra.mxu0 0.0
        %693 = vmatprep.subr.mxu0 0.0
        %694 = vmatpush1.msra.mxu0 0.0
        %695 = vmatprep.subr.mxu0 0.0
        %696 = vmatpush1.msra.mxu0 0.0
        %697 = vmatprep.subr.mxu0 0.0
        %698 = vmatpush1.msra.mxu0 0.0
        %699 = vmatprep.subr.mxu0 0.0
        %700 = vmatpush1.msra.mxu0 0.0
        %701 = vmatprep.subr.mxu0 0.0
        %702 = vmatpush1.msra.mxu0 0.0
        %703 = vmatprep.subr.mxu0 0.0
        %704 = vmatpush1.msra.mxu0 0.0
        %705 = vmatprep.subr.mxu0 0.0
        %706 = vmatpush1.msra.mxu0 0.0
        %707 = vmatprep.subr.mxu0 0.0
        %708 = vmatpush1.msra.mxu0 0.0
        %709 = vmatprep.subr.mxu0 0.0
        %710 = vmatpush1.msra.mxu0 0.0
        %711 = vmatprep.subr.mxu0 0.0
        %712 = vmatpush1.msra.mxu0 0.0
        %713 = vmatprep.subr.mxu0 0.0
        %714 = vmatpush1.msra.mxu0 0.0
        %715 = vmatprep.subr.mxu0 0.0
        %716 = vmatpush1.msra.mxu0 0.0
        %717 = vmatprep.subr.mxu0 0.0
        %718 = vmatpush1.msra.mxu0 0.0
        %719 = vmatprep.subr.mxu0 0.0
        %720 = vmatpush1.msra.mxu0 0.0
        %721 = vmatprep.subr.mxu0 0.0
        %722 = vmatpush1.msra.mxu0 0.0
        %723 = vmatprep.subr.mxu0 0.0
        %724 = vmatpush1.msra.mxu0 0.0
        %725 = vmatprep.subr.mxu0 0.0
        %726 = vmatpush1.msra.mxu0 0.0
        %727 = vmatprep.subr.mxu0 0.0
        %728 = vmatpush1.msra.mxu0 0.0
        %729 = vmatprep.subr.mxu0 0.0
        %730 = vmatpush1.msra.mxu0 0.0
        %731 = vmatprep.subr.mxu0 0.0
        %732 = vmatpush1.msra.mxu0 0.0
        %733 = vmatprep.subr.mxu0 0.0
        %734 = vmatpush1.msra.mxu0 0.0
        %735 = vmatprep.subr.mxu0 0.0
        %736 = vmatpush1.msra.mxu0 0.0
        %737 = vmatprep.subr.mxu0 0.0
        %738 = vmatpush1.msra.mxu0 0.0
        %739 = vmatprep.subr.mxu0 0.0
        %740 = vmatpush1.msra.mxu0 0.0
        %741 = vmatprep.subr.mxu0 0.0
        %742 = vmatpush1.msra.mxu0 0.0
        %743 = vmatprep.subr.mxu0 0.0
        %744 = vmatpush1.msra.mxu0 0.0
        %745 = vmatprep.subr.mxu0 0.0
        %746 = vmatpush1.msra.mxu0 0.0
        %747 = vmatprep.subr.mxu0 0.0
        %748 = vmatpush1.msra.mxu0 0.0
        %749 = vmatprep.subr.mxu0 0.0
        %750 = vmatpush1.msra.mxu0 0.0
        %751 = vmatprep.mubr.f32.mxu0 0.0
        %v752 = vand.u32 %v267, 4294901760
        %v753 = vsub.f32 %v267, %v752
        %v754 = vand.u32 %v753, 4294901760
        %755 = vmatmul.mubr.f32.gmra.mrb[0].mxu0 %v754
        %v756 = vpop.f32.mrb[0].mxu0
        %v757 = vadd.f32 %v633, %v756
        %v758 = vpop.f32.mrb[0].mxu0
        %759 = vmatprep.mubr.f32.mxu0 0.0
        %v760 = vand.u32 %v270, 4294901760
        %v761 = vsub.f32 %v270, %v760
        %v762 = vand.u32 %v761, 4294901760
        %763 = vmatmul.mubr.f32.gmra.mrb[0].mxu0 %v762
        %v764 = vpop.f32.mrb[0].mxu0
        %v765 = vadd.f32 %v640, %v764
        %v766 = vpop.f32.mrb[0].mxu0
        %767 = vmatprep.mubr.f32.mxu0 0.0
        %v768 = vand.u32 %v273, 4294901760
        %v769 = vsub.f32 %v273, %v768
        %v770 = vand.u32 %v769, 4294901760
        %771 = vmatmul.mubr.f32.gmra.mrb[0].mxu0 %v770
        %v772 = vpop.f32.mrb[0].mxu0
        %v773 = vadd.f32 %v647, %v772
        %v774 = vpop.f32.mrb[0].mxu0
        %775 = vmatprep.mubr.f32.mxu0 0.0
        %v776 = vand.u32 %v276, 4294901760
        %v777 = vsub.f32 %v276, %v776
        %v778 = vand.u32 %v777, 4294901760
        %779 = vmatmul.mubr.f32.gmra.mrb[0].mxu0 %v778
        %v780 = vpop.f32.mrb[0].mxu0
        %v781 = vadd.f32 %v654, %v780
        %v782 = vpop.f32.mrb[0].mxu0
        %783 = vmatprep.mubr.f32.mxu0 0.0
        %v784 = vand.u32 %v279, 4294901760
        %v785 = vsub.f32 %v279, %v784
        %v786 = vand.u32 %v785, 4294901760
        %787 = vmatmul.mubr.f32.gmra.mrb[0].mxu0 %v786
        %v788 = vpop.f32.mrb[0].mxu0
        %v789 = vadd.f32 %v661, %v788
        %v790 = vpop.f32.mrb[0].mxu0
        %791 = vmatprep.mubr.f32.mxu0 0.0
        %v792 = vand.u32 %v282, 4294901760
        %v793 = vsub.f32 %v282, %v792
        %v794 = vand.u32 %v793, 4294901760
        %795 = vmatmul.mubr.f32.gmra.mrb[0].mxu0 %v794
        %v796 = vpop.f32.mrb[0].mxu0
        %v797 = vadd.f32 %v668, %v796
        %v798 = vpop.f32.mrb[0].mxu0
        %799 = vmatprep.mubr.f32.mxu0 0.0
        %v800 = vand.u32 %v285, 4294901760
        %v801 = vsub.f32 %v285, %v800
        %v802 = vand.u32 %v801, 4294901760
        %803 = vmatmul.mubr.f32.gmra.mrb[0].mxu0 %v802
        %v804 = vpop.f32.mrb[0].mxu0
        %v805 = vadd.f32 %v675, %v804
        %v806 = vpop.f32.mrb[0].mxu0
        %807 = vmatprep.mubr.f32.mxu0 0.0
        %v808 = vand.u32 %v288, 4294901760
        %v809 = vsub.f32 %v288, %v808
        %v810 = vand.u32 %v809, 4294901760
        %811 = vmatmul.mubr.f32.gmra.mrb[0].mxu0 %v810
        %v812 = vpop.f32.mrb[0].mxu0
        %v813 = vadd.f32 %v682, %v812
        %v814 = vpop.f32.mrb[0].mxu0
        %815 = vdwg.mxu0
        %816 = vmatprep.subr.mxu0 0.0
        %v817 = vand.u32 %v224, 4294901760
        %v818 = vsub.f32 %v224, %v817
        %v819 = vand.u32 %v818, 4294901760
        %820 = vmatpush1.msra.mxu0 %v819
        %821 = vmatprep.subr.mxu0 0.0
        %v822 = vand.u32 %v225, 4294901760
        %v823 = vsub.f32 %v225, %v822
        %v824 = vand.u32 %v823, 4294901760
        %825 = vmatpush1.msra.mxu0 %v824
        %826 = vmatprep.subr.mxu0 0.0
        %827 = vmatpush1.msra.mxu0 0.0
        %828 = vmatprep.subr.mxu0 0.0
        %829 = vmatpush1.msra.mxu0 0.0
        %830 = vmatprep.subr.mxu0 0.0
        %831 = vmatpush1.msra.mxu0 0.0
        %832 = vmatprep.subr.mxu0 0.0
        %833 = vmatpush1.msra.mxu0 0.0
        %834 = vmatprep.subr.mxu0 0.0
        %835 = vmatpush1.msra.mxu0 0.0
        %836 = vmatprep.subr.mxu0 0.0
        %837 = vmatpush1.msra.mxu0 0.0
        %838 = vmatprep.subr.mxu0 0.0
        %839 = vmatpush1.msra.mxu0 0.0
        %840 = vmatprep.subr.mxu0 0.0
        %841 = vmatpush1.msra.mxu0 0.0
        %842 = vmatprep.subr.mxu0 0.0
        %843 = vmatpush1.msra.mxu0 0.0
        %844 = vmatprep.subr.mxu0 0.0
        %845 = vmatpush1.msra.mxu0 0.0
        %846 = vmatprep.subr.mxu0 0.0
        %847 = vmatpush1.msra.mxu0 0.0
        %848 = vmatprep.subr.mxu0 0.0
        %849 = vmatpush1.msra.mxu0 0.0
        %850 = vmatprep.subr.mxu0 0.0
        %851 = vmatpush1.msra.mxu0 0.0
        %852 = vmatprep.subr.mxu0 0.0
        %853 = vmatpush1.msra.mxu0 0.0
        %854 = vmatprep.subr.mxu0 0.0
        %855 = vmatpush1.msra.mxu0 0.0
        %856 = vmatprep.subr.mxu0 0.0
        %857 = vmatpush1.msra.mxu0 0.0
        %858 = vmatprep.subr.mxu0 0.0
        %859 = vmatpush1.msra.mxu0 0.0
        %860 = vmatprep.subr.mxu0 0.0
        %861 = vmatpush1.msra.mxu0 0.0
        %862 = vmatprep.subr.mxu0 0.0
        %863 = vmatpush1.msra.mxu0 0.0
        %864 = vmatprep.subr.mxu0 0.0
        %865 = vmatpush1.msra.mxu0 0.0
        %866 = vmatprep.subr.mxu0 0.0
        %867 = vmatpush1.msra.mxu0 0.0
        %868 = vmatprep.subr.mxu0 0.0
        %869 = vmatpush1.msra.mxu0 0.0
        %870 = vmatprep.subr.mxu0 0.0
        %871 = vmatpush1.msra.mxu0 0.0
        %872 = vmatprep.subr.mxu0 0.0
        %873 = vmatpush1.msra.mxu0 0.0
        %874 = vmatprep.subr.mxu0 0.0
        %875 = vmatpush1.msra.mxu0 0.0
        %876 = vmatprep.subr.mxu0 0.0
        %877 = vmatpush1.msra.mxu0 0.0
        %878 = vmatprep.subr.mxu0 0.0
        %879 = vmatpush1.msra.mxu0 0.0
        %880 = vmatprep.subr.mxu0 0.0
        %881 = vmatpush1.msra.mxu0 0.0
        %882 = vmatprep.subr.mxu0 0.0
        %883 = vmatpush1.msra.mxu0 0.0
        %884 = vmatprep.subr.mxu0 0.0
        %885 = vmatpush1.msra.mxu0 0.0
        %886 = vmatprep.mubr.f32.mxu0 0.0
        %v887 = vand.u32 %v267, 4294901760
        %888 = vmatmul.mubr.f32.gmra.mrb[0].mxu0 %v887
        %v889 = vpop.f32.mrb[0].mxu0
        %v890 = vadd.f32 %v757, %v889
        %v891 = vpop.f32.mrb[0].mxu0
        %892 = vmatprep.mubr.f32.mxu0 0.0
        %v893 = vand.u32 %v270, 4294901760
        %894 = vmatmul.mubr.f32.gmra.mrb[0].mxu0 %v893
        %v895 = vpop.f32.mrb[0].mxu0
        %v896 = vadd.f32 %v765, %v895
        %v897 = vpop.f32.mrb[0].mxu0
        %898 = vmatprep.mubr.f32.mxu0 0.0
        %v899 = vand.u32 %v273, 4294901760
        %900 = vmatmul.mubr.f32.gmra.mrb[0].mxu0 %v899
        %v901 = vpop.f32.mrb[0].mxu0
        %v902 = vadd.f32 %v773, %v901
        %v903 = vpop.f32.mrb[0].mxu0
        %904 = vmatprep.mubr.f32.mxu0 0.0
        %v905 = vand.u32 %v276, 4294901760
        %906 = vmatmul.mubr.f32.gmra.mrb[0].mxu0 %v905
        %v907 = vpop.f32.mrb[0].mxu0
        %v908 = vadd.f32 %v781, %v907
        %v909 = vpop.f32.mrb[0].mxu0
        %910 = vmatprep.mubr.f32.mxu0 0.0
        %v911 = vand.u32 %v279, 4294901760
        %912 = vmatmul.mubr.f32.gmra.mrb[0].mxu0 %v911
        %v913 = vpop.f32.mrb[0].mxu0
        %v914 = vadd.f32 %v789, %v913
        %v915 = vpop.f32.mrb[0].mxu0
        %916 = vmatprep.mubr.f32.mxu0 0.0
        %v917 = vand.u32 %v282, 4294901760
        %918 = vmatmul.mubr.f32.gmra.mrb[0].mxu0 %v917
        %v919 = vpop.f32.mrb[0].mxu0
        %v920 = vadd.f32 %v797, %v919
        %v921 = vpop.f32.mrb[0].mxu0
        %922 = vmatprep.mubr.f32.mxu0 0.0
        %v923 = vand.u32 %v285, 4294901760
        %924 = vmatmul.mubr.f32.gmra.mrb[0].mxu0 %v923
        %v925 = vpop.f32.mrb[0].mxu0
        %v926 = vadd.f32 %v805, %v925
        %v927 = vpop.f32.mrb[0].mxu0
        %928 = vmatprep.mubr.f32.mxu0 0.0
        %v929 = vand.u32 %v288, 4294901760
        %930 = vmatmul.mubr.f32.gmra.mrb[0].mxu0 %v929
        %v931 = vpop.f32.mrb[0].mxu0
        %v932 = vadd.f32 %v813, %v931
        %v933 = vpop.f32.mrb[0].mxu0
        %934 = vdwg.mxu0
        %935 = vmatprep.subr.mxu0 0.0
        %v936 = vand.u32 %v224, 4294901760
        %937 = vmatpush1.msra.mxu0 %v936
        %938 = vmatprep.subr.mxu0 0.0
        %v939 = vand.u32 %v225, 4294901760
        %940 = vmatpush1.msra.mxu0 %v939
        %941 = vmatprep.subr.mxu0 0.0
        %942 = vmatpush1.msra.mxu0 0.0
        %943 = vmatprep.subr.mxu0 0.0
        %944 = vmatpush1.msra.mxu0 0.0
        %945 = vmatprep.subr.mxu0 0.0
        %946 = vmatpush1.msra.mxu0 0.0
        %947 = vmatprep.subr.mxu0 0.0
        %948 = vmatpush1.msra.mxu0 0.0
        %949 = vmatprep.subr.mxu0 0.0
        %950 = vmatpush1.msra.mxu0 0.0
        %951 = vmatprep.subr.mxu0 0.0
        %952 = vmatpush1.msra.mxu0 0.0
        %953 = vmatprep.subr.mxu0 0.0
        %954 = vmatpush1.msra.mxu0 0.0
        %955 = vmatprep.subr.mxu0 0.0
        %956 = vmatpush1.msra.mxu0 0.0
        %957 = vmatprep.subr.mxu0 0.0
        %958 = vmatpush1.msra.mxu0 0.0
        %959 = vmatprep.subr.mxu0 0.0
        %960 = vmatpush1.msra.mxu0 0.0
        %961 = vmatprep.subr.mxu0 0.0
        %962 = vmatpush1.msra.mxu0 0.0
        %963 = vmatprep.subr.mxu0 0.0
        %964 = vmatpush1.msra.mxu0 0.0
        %965 = vmatprep.subr.mxu0 0.0
        %966 = vmatpush1.msra.mxu0 0.0
        %967 = vmatprep.subr.mxu0 0.0
        %968 = vmatpush1.msra.mxu0 0.0
        %969 = vmatprep.subr.mxu0 0.0
        %970 = vmatpush1.msra.mxu0 0.0
        %971 = vmatprep.subr.mxu0 0.0
        %972 = vmatpush1.msra.mxu0 0.0
        %973 = vmatprep.subr.mxu0 0.0
        %974 = vmatpush1.msra.mxu0 0.0
        %975 = vmatprep.subr.mxu0 0.0
        %976 = vmatpush1.msra.mxu0 0.0
        %977 = vmatprep.subr.mxu0 0.0
        %978 = vmatpush1.msra.mxu0 0.0
        %979 = vmatprep.subr.mxu0 0.0
        %980 = vmatpush1.msra.mxu0 0.0
        %981 = vmatprep.subr.mxu0 0.0
        %982 = vmatpush1.msra.mxu0 0.0
        %983 = vmatprep.subr.mxu0 0.0
        %984 = vmatpush1.msra.mxu0 0.0
        %985 = vmatprep.subr.mxu0 0.0
        %986 = vmatpush1.msra.mxu0 0.0
        %987 = vmatprep.subr.mxu0 0.0
        %988 = vmatpush1.msra.mxu0 0.0
        %989 = vmatprep.subr.mxu0 0.0
        %990 = vmatpush1.msra.mxu0 0.0
        %991 = vmatprep.subr.mxu0 0.0
        %992 = vmatpush1.msra.mxu0 0.0
        %993 = vmatprep.subr.mxu0 0.0
        %994 = vmatpush1.msra.mxu0 0.0
        %995 = vmatprep.subr.mxu0 0.0
        %996 = vmatpush1.msra.mxu0 0.0
        %997 = vmatprep.subr.mxu0 0.0
        %998 = vmatpush1.msra.mxu0 0.0
        %999 = vmatprep.subr.mxu0 0.0
        %1000 = vmatpush1.msra.mxu0 0.0
        %1001 = vmatprep.mubr.f32.mxu0 0.0
        %v1002 = vand.u32 %v267, 4294901760
        %1003 = vmatmul.mubr.f32.gmra.mrb[0].mxu0 %v1002
        %v1004 = vpop.f32.mrb[0].mxu0
        %v1005 = vadd.f32 %v890, %v1004
        %v1006 = vpop.f32.mrb[0].mxu0
        %1007 = vmatprep.mubr.f32.mxu0 0.0
        %v1008 = vand.u32 %v270, 4294901760
        %1009 = vmatmul.mubr.f32.gmra.mrb[0].mxu0 %v1008
        %v1010 = vpop.f32.mrb[0].mxu0
        %v1011 = vadd.f32 %v896, %v1010
        %v1012 = vpop.f32.mrb[0].mxu0
        %1013 = vmatprep.mubr.f32.mxu0 0.0
        %v1014 = vand.u32 %v273, 4294901760
        %1015 = vmatmul.mubr.f32.gmra.mrb[0].mxu0 %v1014
        %v1016 = vpop.f32.mrb[0].mxu0
        %v1017 = vadd.f32 %v902, %v1016
        %v1018 = vpop.f32.mrb[0].mxu0
        %1019 = vmatprep.mubr.f32.mxu0 0.0
        %v1020 = vand.u32 %v276, 4294901760
        %1021 = vmatmul.mubr.f32.gmra.mrb[0].mxu0 %v1020
        %v1022 = vpop.f32.mrb[0].mxu0
        %v1023 = vadd.f32 %v908, %v1022
        %v1024 = vpop.f32.mrb[0].mxu0
        %1025 = vmatprep.mubr.f32.mxu0 0.0
        %v1026 = vand.u32 %v279, 4294901760
        %1027 = vmatmul.mubr.f32.gmra.mrb[0].mxu0 %v1026
        %v1028 = vpop.f32.mrb[0].mxu0
        %v1029 = vadd.f32 %v914, %v1028
        %v1030 = vpop.f32.mrb[0].mxu0
        %1031 = vmatprep.mubr.f32.mxu0 0.0
        %v1032 = vand.u32 %v282, 4294901760
        %1033 = vmatmul.mubr.f32.gmra.mrb[0].mxu0 %v1032
        %v1034 = vpop.f32.mrb[0].mxu0
        %v1035 = vadd.f32 %v920, %v1034
        %v1036 = vpop.f32.mrb[0].mxu0
        %1037 = vmatprep.mubr.f32.mxu0 0.0
        %v1038 = vand.u32 %v285, 4294901760
        %1039 = vmatmul.mubr.f32.gmra.mrb[0].mxu0 %v1038
        %v1040 = vpop.f32.mrb[0].mxu0
        %v1041 = vadd.f32 %v926, %v1040
        %v1042 = vpop.f32.mrb[0].mxu0
        %1043 = vmatprep.mubr.f32.mxu0 0.0
        %v1044 = vand.u32 %v288, 4294901760
        %1045 = vmatmul.mubr.f32.gmra.mrb[0].mxu0 %v1044
        %v1046 = vpop.f32.mrb[0].mxu0
        %v1047 = vadd.f32 %v932, %v1046
        %v1048 = vpop.f32.mrb[0].mxu0
        %1049 = vdwg.mxu0
        %1050 = vst [vmem:[%s220] sm:$0xff] %v1005
        %1051 = vst [vmem:[%s220 + $0x8] sm:$0xff] %v1011
        %1052 = vst [vmem:[%s220 + $0x10] sm:$0xff] %v1017
        %1053 = vst [vmem:[%s220 + $0x18] sm:$0xff] %v1023
        %1054 = vst [vmem:[%s220 + $0x20] sm:$0xff] %v1029
        %1055 = vst [vmem:[%s220 + $0x28] sm:$0xff] %v1035
        %1056 = vst [vmem:[%s220 + $0x30] sm:$0xff] %v1041
        %1057 = vst [vmem:[%s220 + $0x38] sm:$0xff] %v1047
        %s1058 = sand.u32 %s113, 1
        %s1059 = scalar_lea.sflag [#allocation4], %s1058
        %s1060 = sand.u32 %s113, 1
        %s1061 = smul.addr %s1060, 64
        %s1062 = scalar_lea.vmem [#allocation7], %s1061
        // Predicated region
        $region41: #{tpu_custom_call.1} parent=31 // pred_check
          %p1063 = pneg %p123
        $region42: #{tpu_custom_call.1} parent=31 // pred_check_branch
          %1065 = sbr.rel (%p1063) target = $region44
        $region43: #{tpu_custom_call.1} parent=31 // pred_region
          %s1066 = smul.u32 8, %s26
          %s1068 = ssub.s32 1024, 1024
          %1069 = vsyncadd %s1059, %s1068
          %s1070 = smul.addr %s25, 8
          %s1071 = sadd.s32 %s1066, %s1070
          %s1072 = smul.addr %s1071, 128
          %s1073 = scalar_lea.hbm %s3, %s1072
          %s1074 = sshll.u32 %s1062, 4
          %s1075 = int_to_ptr.vmem [resolvable:$true] %s1074
          %1080 = dma.vmem_to_hbm [thread:$0]  %s1075, 1024, %s1073, %s1059, 128, 128, 8
        $region44: #{tpu_custom_call.1} parent=31 // pred_fallthru
          _
      $region32: #{tpu_custom_call.1} parent=5 // pred_fallthru
        _
      %p1081 = scmp.le.s32.totalorder 2, %s16
      // Predicated region
      $region45: #{tpu_custom_call.1} parent=5 // pred_check
        %p1082 = pneg %p1081
      $region46: #{tpu_custom_call.1} parent=5 // pred_check_branch
        %1084 = sbr.rel (%p1082) target = $region48
      $region47: #{tpu_custom_call.1} parent=5 // pred_region
        %s1085 = ssub.s32 %s16, 2
        // Predicated region
        $region49: #{tpu_custom_call.1} parent=47 // pred_check
          %p1086 = pneg %p129
        $region50: #{tpu_custom_call.1} parent=47 // pred_check_branch
          %1088 = sbr.rel (%p1086) target = $region52
        $region51: #{tpu_custom_call.1} parent=47 // pred_region
          %s1089 = sand.u32 %s114, 1
          %s1090 = scalar_lea.sflag [#allocation4], %s1089
          %s1091 = sand.u32 %s114, 1
          %s1092 = smul.addr %s1091, 64
          %s1093 = scalar_lea.vmem [#allocation7], %s1092
          %1094 = dma.done %s1090, 1024
        $region52: #{tpu_custom_call.1} parent=47 // pred_fallthru
          _
      $region48: #{tpu_custom_call.1} parent=5 // pred_fallthru
        _
    $region6: #{tpu_custom_call.1} parent=1 // loop_footer
      %s20 = sadd.s32 1, %s16
    $region7: #{tpu_custom_call.1} parent=1 // loop_footer_branch
      %15 = sbr.rel target = $region3
    $region8: #{tpu_custom_call.1} parent=1 // loop_exit
      _
    %1095 = vsyncpa [#allocation3], 1
    %s1096 = scalar_lea.sflag [#allocation3], 1
    %1097 = vsyncpa %s1096, 1
    %1098 = vsyncpa [#allocation6], 1
    %1099 = vsyncpa [#allocation4], 1
    %s1100 = scalar_lea.sflag [#allocation4], 1
    %1101 = vsyncpa %s1100, 1

</llo_original>
